<compile_context>
chip_gen: v7x
topology: tpu7x:2x2x1
jax: 0.10.0
libtpu: 0.0.40
codegen_flags: <defaults>
</compile_context>

<pallas_src>
import functools
import math

import jax
import jax.numpy as jnp
import numpy as np
from jax.experimental import pallas as pl
from jax.experimental.pallas import tpu as pltpu


def _arcface_kernel(emb_ref, w_ref, label_ref, o_ref, inv_norm_ref, *,
                    s, cos_m, sin_m, mm, threshold, block_c, norm_chunk):
    """Grid = (class blocks, batch tiles); one (block_b, bc) output tile per step.

    emb_ref      : (block_b, E)   bf16 embeddings (batch tile)
    w_ref        : (E, bc)        bf16 un-normalized class weights (class block)
    label_ref    : (block_b, 1)   int32 class labels
    o_ref        : (block_b, bc)  output logits tile
    inv_norm_ref : (1, bc)        f32 scratch: 1/||w_col||, persists across batch tiles
    """
    Bb, BC = o_ref.shape
    E = w_ref.shape[0]
    ci = pl.program_id(0)
    bi = pl.program_id(1)

    # ---- per-class L2 norm: computed once per class block (first batch tile) ----
    @pl.when(bi == 0)
    def _():
        if norm_chunk >= E:
            wf = w_ref[...].astype(jnp.float32)
            ssq = jnp.sum(wf * wf, axis=0, keepdims=True)
        else:
            def body(i, acc):
                r = pl.multiple_of(i * norm_chunk, norm_chunk)
                wc = w_ref[pl.ds(r, norm_chunk), :].astype(jnp.float32)
                return acc + jnp.sum(wc * wc, axis=0, keepdims=True)
            ssq = jax.lax.fori_loop(0, E // norm_chunk, body,
                                    jnp.zeros((1, BC), jnp.float32),
                                    unroll=True)
        inv_norm_ref[...] = jax.lax.rsqrt(ssq)          # EUP rsqrt (free slot)

    # ---- cos(theta) = emb @ (w / ||w||) : bf16 MXU matmul, f32 accumulate ----
    cos_theta = jnp.dot(emb_ref[...], w_ref[...],
                        preferred_element_type=jnp.float32)
    cos_theta = cos_theta * inv_norm_ref[...]
    cos_theta = jnp.clip(cos_theta, -1.0, 1.0)

    # ---- additive angular margin ----
    sin_theta = jnp.sqrt(jnp.maximum(1.0 - cos_theta * cos_theta, 0.0))
    cos_theta_m = cos_theta * cos_m - sin_theta * sin_m
    cos_theta_m = jnp.where(cos_theta - threshold <= 0.0,
                            cos_theta - mm, cos_theta_m)

    # ---- substitute the margin value only at each row's label column ----
    col = jax.lax.broadcasted_iota(jnp.int32, (Bb, BC), dimension=1)  # block-local
    local_label = label_ref[...] - ci * block_c                        # (Bb, 1)
    out = jnp.where(local_label == col, cos_theta_m, cos_theta)

    o_ref[...] = (out * s).astype(o_ref.dtype)


def _choose_block_c(B_tile, E, C, vmem_budget_bytes):
    """Largest lane-dense class block that keeps double-buffering in budget."""
    c_pad128 = ((C + 127) // 128) * 128
    # per-column bytes: 2x bf16 weight buffers + 2x f32 output buffers
    # + a few (B_tile, bc) f32 intermediates + norm scratch.
    per_col = 4 * E + 20 * B_tile + 4
    fixed = 4 * B_tile * E + 4096           # double-buffered bf16 embeddings + slack
    bc = (vmem_budget_bytes - fixed) // per_col
    bc = max(128, (bc // 128) * 128)
    bc = min(bc, 8192)                      # DMA-size sweet spot cap
    bc = min(bc, c_pad128)
    return bc


def arcface_forward(embeddings, kernel, label, *, s=64.0, m=0.5,
                    block_c=None, block_b=None,
                    vmem_budget_bytes=28 * 1024 * 1024,
                    out_dtype=jnp.float32):
    """embeddings: (B, E) f32, kernel: (E, C) f32, label: (B,) int.

    Returns (B, C) scaled margin logits (matches PyTorch Arcface.forward).
    """
    B, E = embeddings.shape
    E2, C = kernel.shape
    assert E == E2, (E, E2)

    cos_m = math.cos(m)
    sin_m = math.sin(m)
    mm_ = sin_m * m
    threshold = math.cos(math.pi - m)

    # batch tile: keeps the (block_b, bc) f32 output double-buffers bounded on v7x
    if block_b is None:
        block_b = B if B <= 256 else 256
    block_b = min(int(block_b), B)

    # class-block size: lane-dense multiple of 128, sized against the VMEM budget
    if block_c is None:
        bc = _choose_block_c(block_b, E, C, vmem_budget_bytes)
    else:
        c_pad128 = ((C + 127) // 128) * 128
        bc = min(max(128, (int(block_c) // 128) * 128), c_pad128)

    n_c = pl.cdiv(C, bc)
    n_b = pl.cdiv(B, block_b)

    # chunk size for the in-kernel sum-of-squares reduction over E
    if E <= 256:
        norm_chunk = E
    elif E % 256 == 0:
        norm_chunk = 256
    elif E % 128 == 0:
        norm_chunk = 128
    else:
        norm_chunk = E

    # bf16 operands for the MXU (f32 accumulation happens inside the kernel)
    emb_bf = embeddings.astype(jnp.bfloat16)
    w_bf = kernel.astype(jnp.bfloat16)
    label2d = label.astype(jnp.int32).reshape(B, 1)

    kernel_fn = functools.partial(
        _arcface_kernel, s=float(s), cos_m=cos_m, sin_m=sin_m,
        mm=mm_, threshold=threshold, block_c=bc, norm_chunk=norm_chunk)

    out_itemsize = jnp.dtype(out_dtype).itemsize
    flops = 2 * B * E * C + 3 * E * C + 10 * B * C
    transcendentals = C + B * C
    bytes_accessed = (2 * B * E + 2 * E * C + 4 * B + out_itemsize * B * C)

    out = pl.pallas_call(
        kernel_fn,
        out_shape=jax.ShapeDtypeStruct((B, C), out_dtype),
        grid_spec=pltpu.PrefetchScalarGridSpec(
            num_scalar_prefetch=0,
            grid=(n_c, n_b),
            in_specs=[
                # embeddings: indexed by the batch axis only
                pl.BlockSpec((block_b, E), lambda ci, bi: (bi, 0)),
                # class weights: indexed by the class axis only -> not re-DMA'd
                # across batch tiles (weight matrix streamed from HBM once)
                pl.BlockSpec((E, bc), lambda ci, bi: (0, ci)),
                # labels: indexed by the batch axis only
                pl.BlockSpec((block_b, 1), lambda ci, bi: (bi, 0)),
            ],
            out_specs=pl.BlockSpec((block_b, bc), lambda ci, bi: (bi, ci)),
            scratch_shapes=[pltpu.VMEM((1, bc), jnp.float32)],   # 1/||w_col||
        ),
        compiler_params=pltpu.CompilerParams(
            # class axis independent ("parallel" -> v7x megacore split);
            # batch axis carries the norm scratch -> "arbitrary".
            dimension_semantics=("parallel", "arbitrary"),
            # big enough for the budget-sized double buffers on v5e/v6e,
            # still well under v7x's 64 MiB per-TC VMEM.
            vmem_limit_bytes=48 * 1024 * 1024),
        cost_estimate=pl.CostEstimate(
            flops=flops,
            transcendentals=transcendentals,
            bytes_accessed=bytes_accessed),
    )(emb_bf, w_bf, label2d)

    return out


def arcface_reference(embeddings, kernel, label, *, s=64.0, m=0.5):
    """Pure-JAX reference (same bf16-matmul precision policy as the kernel)."""
    cos_m = math.cos(m)
    sin_m = math.sin(m)
    mm_ = sin_m * m
    threshold = math.cos(math.pi - m)
    C = kernel.shape[1]

    w_bf = kernel.astype(jnp.bfloat16)
    wf = w_bf.astype(jnp.float32)
    inv_norm = jax.lax.rsqrt(jnp.sum(wf * wf, axis=0, keepdims=True))
    cos_theta = jnp.dot(embeddings.astype(jnp.bfloat16), w_bf,
                        preferred_element_type=jnp.float32) * inv_norm
    cos_theta = jnp.clip(cos_theta, -1.0, 1.0)
    sin_theta = jnp.sqrt(jnp.maximum(1.0 - cos_theta * cos_theta, 0.0))
    cos_theta_m = cos_theta * cos_m - sin_theta * sin_m
    cos_theta_m = jnp.where(cos_theta - threshold <= 0.0,
                            cos_theta - mm_, cos_theta_m)
    onehot = (label.astype(jnp.int32)[:, None]
              == jnp.arange(C, dtype=jnp.int32)[None, :])
    out = jnp.where(onehot, cos_theta_m, cos_theta)
    return out * s


if __name__ == "__main__":
    key = jax.random.PRNGKey(0)
    ke, kw, kl = jax.random.split(key, 3)

    # Small shapes consistent with Arcface(embedding_size, classnum):
    # batch=8, embedding_size=128, classnum=1024 (lane-aligned).
    B, E, C = 8, 128, 1024
    emb = jax.random.normal(ke, (B, E), jnp.float32)
    emb = emb / jnp.linalg.norm(emb, axis=1, keepdims=True)   # unit-norm embeddings
    weight = jax.random.normal(kw, (E, C), jnp.float32)        # the "kernel" Parameter
    label = jax.random.randint(kl, (B,), 0, C, dtype=jnp.int32)

    out = arcface_forward(emb, weight, label, s=64.0, m=0.5)
    out = jax.block_until_ready(out)
    assert out.shape == (B, C), out.shape

    ref = arcface_reference(emb, weight, label, s=64.0, m=0.5)
    np.testing.assert_allclose(np.asarray(out), np.asarray(ref),
                               rtol=1e-4, atol=1e-3)
    print("KERNEL_OK")
</pallas_src>

<mosaic_0001>
module attributes {stable_mosaic.version = 11 : i64} {
  func.func @_arcface_kernel(%arg0: i32, %arg1: i32, %arg2: memref<8x128xbf16, #tpu.memory_space<vmem>>, %arg3: memref<128x1024xbf16, #tpu.memory_space<vmem>>, %arg4: memref<8x1xi32, #tpu.memory_space<vmem>>, %arg5: memref<8x1024xf32, #tpu.memory_space<vmem>>, %arg6: memref<1x1024xf32, #tpu.memory_space<vmem>>) attributes {dimension_semantics = [#tpu.dimension_semantics<parallel>, #tpu.dimension_semantics<arbitrary>], iteration_bounds = array<i64: 1, 1>, scalar_prefetch = 0 : i64, scratch_operands = 1 : i64, tpu.core_type = #tpu.core_type<tc>, window_params = [{transform_indices = @transform_0, window_bounds = array<i64: 8, 128>}, {transform_indices = @transform_1, window_bounds = array<i64: 128, 1024>}, {transform_indices = @transform_2, window_bounds = array<i64: 8, 1>}, {transform_indices = @transform_3, window_bounds = array<i64: 8, 1024>}]} {
    %c0_i32 = arith.constant 0 : i32
    %0 = arith.cmpi eq, %arg1, %c0_i32 : i32
    %1 = arith.extui %0 : i1 to i32
    %c0_i32_0 = arith.constant 0 : i32
    %2 = arith.cmpi ne, %1, %c0_i32_0 : i32
    scf.if %2 {
      %c0_20 = arith.constant 0 : index
      %c0_21 = arith.constant 0 : index
      %42 = vector.load %arg3[%c0_20, %c0_21] : memref<128x1024xbf16, #tpu.memory_space<vmem>>, vector<128x1024xbf16>
      %43 = arith.extf %42 : vector<128x1024xbf16> to vector<128x1024xf32>
      %44 = arith.mulf %43, %43 : vector<128x1024xf32>
      %cst_22 = arith.constant dense<0.000000e+00> : vector<1024xf32>
      %45 = vector.multi_reduction <add>, %44, %cst_22 [0] : vector<128x1024xf32> to vector<1024xf32>
      %46 = vector.shape_cast %45 : vector<1024xf32> to vector<1x1024xf32>
      %47 = math.rsqrt %46 : vector<1x1024xf32>
      %c0_23 = arith.constant 0 : index
      %c0_24 = arith.constant 0 : index
      %48 = vector.load %arg6[%c0_23, %c0_24] : memref<1x1024xf32, #tpu.memory_space<vmem>>, vector<1x1024xf32>
      tpu.vector_store %arg6[%c0_23, %c0_24], %47 {strides = array<i32>} : memref<1x1024xf32, #tpu.memory_space<vmem>>, vector<1x1024xf32>,
    } else {
    }
    %c0 = arith.constant 0 : index
    %c0_1 = arith.constant 0 : index
    %3 = vector.load %arg2[%c0, %c0_1] : memref<8x128xbf16, #tpu.memory_space<vmem>>, vector<8x128xbf16>
    %c0_2 = arith.constant 0 : index
    %c0_3 = arith.constant 0 : index
    %4 = vector.load %arg3[%c0_2, %c0_3] : memref<128x1024xbf16, #tpu.memory_space<vmem>>, vector<128x1024xbf16>
    %cst = arith.constant dense<0.000000e+00> : vector<8x1024xf32>
    %5 = tpu.matmul %3, %4, %cst {dimension_numbers = #tpu.dot_dimension_numbers<[1], [0], [0], [1], [0, 0, 1, 1], [], []>} : vector<8x128xbf16>, vector<128x1024xbf16>, vector<8x1024xf32> -> vector<8x1024xf32>
    %c0_4 = arith.constant 0 : index
    %c0_5 = arith.constant 0 : index
    %6 = vector.load %arg6[%c0_4, %c0_5] : memref<1x1024xf32, #tpu.memory_space<vmem>>, vector<1x1024xf32>
    %7 = vector.broadcast %6 : vector<1x1024xf32> to vector<8x1024xf32>
    %8 = arith.mulf %5, %7 : vector<8x1024xf32>
    %cst_6 = arith.constant -1.000000e+00 : f32
    %cst_7 = arith.constant 1.000000e+00 : f32
    %9 = vector.broadcast %cst_6 : f32 to vector<8x1024xf32>
    %10 = arith.maximumf %9, %8 : vector<8x1024xf32>
    %11 = vector.broadcast %cst_7 : f32 to vector<8x1024xf32>
    %12 = arith.minimumf %11, %10 : vector<8x1024xf32>
    %13 = arith.mulf %12, %12 : vector<8x1024xf32>
    %cst_8 = arith.constant 1.000000e+00 : f32
    %14 = vector.broadcast %cst_8 : f32 to vector<8x1024xf32>
    %15 = arith.subf %14, %13 : vector<8x1024xf32>
    %cst_9 = arith.constant 0.000000e+00 : f32
    %16 = vector.broadcast %cst_9 : f32 to vector<8x1024xf32>
    %17 = arith.maximumf %15, %16 : vector<8x1024xf32>
    %18 = math.sqrt %17 : vector<8x1024xf32>
    %cst_10 = arith.constant 0.87758255 : f32
    %19 = vector.broadcast %cst_10 : f32 to vector<8x1024xf32>
    %20 = arith.mulf %12, %19 : vector<8x1024xf32>
    %cst_11 = arith.constant 0.47942555 : f32
    %21 = vector.broadcast %cst_11 : f32 to vector<8x1024xf32>
    %22 = arith.mulf %18, %21 : vector<8x1024xf32>
    %23 = arith.subf %20, %22 : vector<8x1024xf32>
    %cst_12 = arith.constant -0.87758255 : f32
    %24 = vector.broadcast %cst_12 : f32 to vector<8x1024xf32>
    %25 = arith.subf %12, %24 : vector<8x1024xf32>
    %cst_13 = arith.constant 0.000000e+00 : f32
    %26 = vector.broadcast %cst_13 : f32 to vector<8x1024xf32>
    %27 = arith.cmpf ole, %25, %26 : vector<8x1024xf32>
    %cst_14 = arith.constant 0.239712775 : f32
    %28 = vector.broadcast %cst_14 : f32 to vector<8x1024xf32>
    %29 = arith.subf %12, %28 : vector<8x1024xf32>
    %30 = arith.select %27, %29, %23 : vector<8x1024xi1>, vector<8x1024xf32>
    %31 = tpu.iota {dimensions = array<i32: 1>} : vector<8x1024xi32>
    %c0_15 = arith.constant 0 : index
    %c0_16 = arith.constant 0 : index
    %32 = vector.load %arg4[%c0_15, %c0_16] : memref<8x1xi32, #tpu.memory_space<vmem>>, vector<8x1xi32>
    %c1024_i32 = arith.constant 1024 : i32
    %33 = arith.muli %arg0, %c1024_i32 : i32
    %34 = vector.broadcast %33 : i32 to vector<8x1xi32>
    %35 = arith.subi %32, %34 : vector<8x1xi32>
    %36 = vector.broadcast %35 : vector<8x1xi32> to vector<8x1024xi32>
    %37 = arith.cmpi eq, %36, %31 : vector<8x1024xi32>
    %38 = arith.select %37, %30, %12 : vector<8x1024xi1>, vector<8x1024xf32>
    %cst_17 = arith.constant 6.400000e+01 : f32
    %39 = vector.broadcast %cst_17 : f32 to vector<8x1024xf32>
    %40 = arith.mulf %38, %39 : vector<8x1024xf32>
    %c0_18 = arith.constant 0 : index
    %c0_19 = arith.constant 0 : index
    %41 = vector.load %arg5[%c0_18, %c0_19] : memref<8x1024xf32, #tpu.memory_space<vmem>>, vector<8x1024xf32>
    tpu.vector_store %arg5[%c0_18, %c0_19], %40 {strides = array<i32>} : memref<8x1024xf32, #tpu.memory_space<vmem>>, vector<8x1024xf32>,
    return
  }
  func.func @transform_0(%arg0: i32, %arg1: i32) -> (i32, i32) {
    %c0_i32 = arith.constant 0 : i32
    %c0_i32_0 = arith.constant 0 : i32
    return %arg1, %c0_i32 : i32, i32
  }
  func.func @transform_1(%arg0: i32, %arg1: i32) -> (i32, i32) {
    %c0_i32 = arith.constant 0 : i32
    %c0_i32_0 = arith.constant 0 : i32
    return %c0_i32, %arg0 : i32, i32
  }
  func.func @transform_2(%arg0: i32, %arg1: i32) -> (i32, i32) {
    %c0_i32 = arith.constant 0 : i32
    %c0_i32_0 = arith.constant 0 : i32
    return %arg1, %c0_i32 : i32, i32
  }
  func.func @transform_3(%arg0: i32, %arg1: i32) -> (i32, i32) {
    %c0_i32 = arith.constant 0 : i32
    return %arg1, %arg0 : i32, i32
  }
}

</mosaic_0001>

<llo_original>
// kernel: tpu_custom_call.1
$region0: #{tpu_custom_call.1}
  #allocation0 [shape = 'u32[]', space=smem, size = 0x4, offset = 0x4, fixed_abs, tag = 'smem constant byte address 0x4 - core index']
  #allocation1 [shape = 'u32[144,128]{1,0:T(1,128)}', space=vmem, size = 0x12000, scoped, tag = 'internal scratch']
  #allocation2 [shape = 'f32[1,1024]{1,0:T(1,128)}', space=vmem, size = 0x1000, scoped, tag = 'scratch operand']
  %s0 = inlined_call_operand.vmem [shape: bf16[8,128], index: 0, kind: input, shape index: {}]
  %s1 = inlined_call_operand.hbm [shape: bf16[128,1024], index: 1, kind: input, shape index: {}]
  %s2 = inlined_call_operand.vmem [shape: s32[8,1], index: 2, kind: input, shape index: {}]
  %s3 = inlined_call_operand.hbm [shape: f32[8,1024], index: 3, kind: output, shape index: {}]
  %s4 = sld [smem:[#allocation0]]
  $region30: #{tpu_custom_call.1} parent=0
    _
  %s6 = ssub.s32 1, %s4
  %s7 = scalar_select 0, %s6, %s4
  $region1: #{tpu_custom_call.1} parent=0
    #allocation3 [shape = 'u8[262144]{0}', space=vmem, size = 0x40000, scoped, tag = 'input window, operand 1, single buffered']
    #allocation4 [shape = 's32[1]{0}', space=sflag, size = 0x4, scoped, tag = 'scoped memory for tpu_custom_call.1']
    #allocation5 [shape = 's32[1]{0}', space=sflag, size = 0x4, scoped, tag = 'scoped memory for tpu_custom_call.1']
    #allocation6 [shape = 'u8[32768]{0}', space=vmem, size = 0x8000, scoped, tag = 'output window, operand 0, single buffered']
    %8 = vsyncpa [#allocation4], 0
    %9 = vsyncpa [#allocation5], 0
    // Predicated region
    $region2: #{tpu_custom_call.1} parent=1 // pred_check
      _
    $region3: #{tpu_custom_call.1} parent=1 // pred_check_branch
      %11 = sbr.rel (0) target = $region5
    $region4: #{tpu_custom_call.1} parent=1 // pred_region
      _
    $region5: #{tpu_custom_call.1} parent=1 // pred_fallthru
      _
    // Predicated region
    $region6: #{tpu_custom_call.1} parent=1 // pred_check
      _
    $region7: #{tpu_custom_call.1} parent=1 // pred_check_branch
      %13 = sbr.rel (0) target = $region9
    $region8: #{tpu_custom_call.1} parent=1 // pred_region
      %s15 = ssub.s32 8192, 8192
      %16 = vsyncadd [#allocation4], %s15
      %s17 = sshll.u32 [#allocation3], 4
      %s18 = int_to_ptr.vmem [resolvable:$true] %s17
      %23 = dma.hbm_to_vmem [thread:$0]  %s1, 8192, %s18, [#allocation4], 512, 512, 32
    $region9: #{tpu_custom_call.1} parent=1 // pred_fallthru
      _
    // Predicated region
    $region10: #{tpu_custom_call.1} parent=1 // pred_check
      _
    $region11: #{tpu_custom_call.1} parent=1 // pred_check_branch
      %25 = sbr.rel (0) target = $region13
    $region12: #{tpu_custom_call.1} parent=1 // pred_region
      _
    $region13: #{tpu_custom_call.1} parent=1 // pred_fallthru
      _
    // Predicated region
    $region14: #{tpu_custom_call.1} parent=1 // pred_check
      _
    $region15: #{tpu_custom_call.1} parent=1 // pred_check_branch
      %27 = sbr.rel (0) target = $region17
    $region16: #{tpu_custom_call.1} parent=1 // pred_region
      %28 = dma.done [#allocation4], 8192
    $region17: #{tpu_custom_call.1} parent=1 // pred_fallthru
      _
    %p30 = scmp.eq.s32.totalorder 0, 0
    // Predicated region
    $region18: #{tpu_custom_call.1} parent=1 // pred_check
      %p31 = pneg %p30
    $region19: #{tpu_custom_call.1} parent=1 // pred_check_branch
      %33 = sbr.rel (%p31) target = $region21
    $region20: #{tpu_custom_call.1} parent=1 // pred_region
      %v34 = vld [vmem:[#allocation3] sm:$0xff]
      %v35 = vld [vmem:[#allocation3 + $0x8] sm:$0xff]
      %v36 = vld [vmem:[#allocation3 + $0x10] sm:$0xff]
      %v37 = vld [vmem:[#allocation3 + $0x18] sm:$0xff]
      %v38 = vld [vmem:[#allocation3 + $0x20] sm:$0xff]
      %v39 = vld [vmem:[#allocation3 + $0x28] sm:$0xff]
      %v40 = vld [vmem:[#allocation3 + $0x30] sm:$0xff]
      %v41 = vld [vmem:[#allocation3 + $0x38] sm:$0xff]
      %v42 = vld [vmem:[#allocation3 + $0x40] sm:$0xff]
      %v43 = vld [vmem:[#allocation3 + $0x48] sm:$0xff]
      %v44 = vld [vmem:[#allocation3 + $0x50] sm:$0xff]
      %v45 = vld [vmem:[#allocation3 + $0x58] sm:$0xff]
      %v46 = vld [vmem:[#allocation3 + $0x60] sm:$0xff]
      %v47 = vld [vmem:[#allocation3 + $0x68] sm:$0xff]
      %v48 = vld [vmem:[#allocation3 + $0x70] sm:$0xff]
      %v49 = vld [vmem:[#allocation3 + $0x78] sm:$0xff]
      %v50 = vld [vmem:[#allocation3 + $0x80] sm:$0xff]
      %v51 = vld [vmem:[#allocation3 + $0x88] sm:$0xff]
      %v52 = vld [vmem:[#allocation3 + $0x90] sm:$0xff]
      %v53 = vld [vmem:[#allocation3 + $0x98] sm:$0xff]
      %v54 = vld [vmem:[#allocation3 + $0xa0] sm:$0xff]
      %v55 = vld [vmem:[#allocation3 + $0xa8] sm:$0xff]
      %v56 = vld [vmem:[#allocation3 + $0xb0] sm:$0xff]
      %v57 = vld [vmem:[#allocation3 + $0xb8] sm:$0xff]
      %v58 = vld [vmem:[#allocation3 + $0xc0] sm:$0xff]
      %v59 = vld [vmem:[#allocation3 + $0xc8] sm:$0xff]
      %v60 = vld [vmem:[#allocation3 + $0xd0] sm:$0xff]
      %v61 = vld [vmem:[#allocation3 + $0xd8] sm:$0xff]
      %v62 = vld [vmem:[#allocation3 + $0xe0] sm:$0xff]
      %v63 = vld [vmem:[#allocation3 + $0xe8] sm:$0xff]
      %v64 = vld [vmem:[#allocation3 + $0xf0] sm:$0xff]
      %v65 = vld [vmem:[#allocation3 + $0xf8] sm:$0xff]
      %v66 = vld [vmem:[#allocation3 + $0x100] sm:$0xff]
      %v67 = vld [vmem:[#allocation3 + $0x108] sm:$0xff]
      %v68 = vld [vmem:[#allocation3 + $0x110] sm:$0xff]
      %v69 = vld [vmem:[#allocation3 + $0x118] sm:$0xff]
      %v70 = vld [vmem:[#allocation3 + $0x120] sm:$0xff]
      %v71 = vld [vmem:[#allocation3 + $0x128] sm:$0xff]
      %v72 = vld [vmem:[#allocation3 + $0x130] sm:$0xff]
      %v73 = vld [vmem:[#allocation3 + $0x138] sm:$0xff]
      %v74 = vld [vmem:[#allocation3 + $0x140] sm:$0xff]
      %v75 = vld [vmem:[#allocation3 + $0x148] sm:$0xff]
      %v76 = vld [vmem:[#allocation3 + $0x150] sm:$0xff]
      %v77 = vld [vmem:[#allocation3 + $0x158] sm:$0xff]
      %v78 = vld [vmem:[#allocation3 + $0x160] sm:$0xff]
      %v79 = vld [vmem:[#allocation3 + $0x168] sm:$0xff]
      %v80 = vld [vmem:[#allocation3 + $0x170] sm:$0xff]
      %v81 = vld [vmem:[#allocation3 + $0x178] sm:$0xff]
      %v82 = vld [vmem:[#allocation3 + $0x180] sm:$0xff]
      %v83 = vld [vmem:[#allocation3 + $0x188] sm:$0xff]
      %v84 = vld [vmem:[#allocation3 + $0x190] sm:$0xff]
      %v85 = vld [vmem:[#allocation3 + $0x198] sm:$0xff]
      %v86 = vld [vmem:[#allocation3 + $0x1a0] sm:$0xff]
      %v87 = vld [vmem:[#allocation3 + $0x1a8] sm:$0xff]
      %v88 = vld [vmem:[#allocation3 + $0x1b0] sm:$0xff]
      %v89 = vld [vmem:[#allocation3 + $0x1b8] sm:$0xff]
      %v90 = vld [vmem:[#allocation3 + $0x1c0] sm:$0xff]
      %v91 = vld [vmem:[#allocation3 + $0x1c8] sm:$0xff]
      %v92 = vld [vmem:[#allocation3 + $0x1d0] sm:$0xff]
      %v93 = vld [vmem:[#allocation3 + $0x1d8] sm:$0xff]
      %v94 = vld [vmem:[#allocation3 + $0x1e0] sm:$0xff]
      %v95 = vld [vmem:[#allocation3 + $0x1e8] sm:$0xff]
      %v96 = vld [vmem:[#allocation3 + $0x1f0] sm:$0xff]
      %v97 = vld [vmem:[#allocation3 + $0x1f8] sm:$0xff]
      %v98 = vunpack.c.l.bf16 %v34
      %v99 = vunpack.c.h.bf16 %v34
      %v100 = vunpack.c.l.bf16 %v35
      %v101 = vunpack.c.h.bf16 %v35
      %v102 = vunpack.c.l.bf16 %v36
      %v103 = vunpack.c.h.bf16 %v36
      %v104 = vunpack.c.l.bf16 %v37
      %v105 = vunpack.c.h.bf16 %v37
      %v106 = vunpack.c.l.bf16 %v38
      %v107 = vunpack.c.h.bf16 %v38
      %v108 = vunpack.c.l.bf16 %v39
      %v109 = vunpack.c.h.bf16 %v39
      %v110 = vunpack.c.l.bf16 %v40
      %v111 = vunpack.c.h.bf16 %v40
      %v112 = vunpack.c.l.bf16 %v41
      %v113 = vunpack.c.h.bf16 %v41
      %v114 = vunpack.c.l.bf16 %v42
      %v115 = vunpack.c.h.bf16 %v42
      %v116 = vunpack.c.l.bf16 %v43
      %v117 = vunpack.c.h.bf16 %v43
      %v118 = vunpack.c.l.bf16 %v44
      %v119 = vunpack.c.h.bf16 %v44
      %v120 = vunpack.c.l.bf16 %v45
      %v121 = vunpack.c.h.bf16 %v45
      %v122 = vunpack.c.l.bf16 %v46
      %v123 = vunpack.c.h.bf16 %v46
      %v124 = vunpack.c.l.bf16 %v47
      %v125 = vunpack.c.h.bf16 %v47
      %v126 = vunpack.c.l.bf16 %v48
      %v127 = vunpack.c.h.bf16 %v48
      %v128 = vunpack.c.l.bf16 %v49
      %v129 = vunpack.c.h.bf16 %v49
      %v130 = vunpack.c.l.bf16 %v50
      %v131 = vunpack.c.h.bf16 %v50
      %v132 = vunpack.c.l.bf16 %v51
      %v133 = vunpack.c.h.bf16 %v51
      %v134 = vunpack.c.l.bf16 %v52
      %v135 = vunpack.c.h.bf16 %v52
      %v136 = vunpack.c.l.bf16 %v53
      %v137 = vunpack.c.h.bf16 %v53
      %v138 = vunpack.c.l.bf16 %v54
      %v139 = vunpack.c.h.bf16 %v54
      %v140 = vunpack.c.l.bf16 %v55
      %v141 = vunpack.c.h.bf16 %v55
      %v142 = vunpack.c.l.bf16 %v56
      %v143 = vunpack.c.h.bf16 %v56
      %v144 = vunpack.c.l.bf16 %v57
      %v145 = vunpack.c.h.bf16 %v57
      %v146 = vunpack.c.l.bf16 %v58
      %v147 = vunpack.c.h.bf16 %v58
      %v148 = vunpack.c.l.bf16 %v59
      %v149 = vunpack.c.h.bf16 %v59
      %v150 = vunpack.c.l.bf16 %v60
      %v151 = vunpack.c.h.bf16 %v60
      %v152 = vunpack.c.l.bf16 %v61
      %v153 = vunpack.c.h.bf16 %v61
      %v154 = vunpack.c.l.bf16 %v62
      %v155 = vunpack.c.h.bf16 %v62
      %v156 = vunpack.c.l.bf16 %v63
      %v157 = vunpack.c.h.bf16 %v63
      %v158 = vunpack.c.l.bf16 %v64
      %v159 = vunpack.c.h.bf16 %v64
      %v160 = vunpack.c.l.bf16 %v65
      %v161 = vunpack.c.h.bf16 %v65
      %v162 = vunpack.c.l.bf16 %v66
      %v163 = vunpack.c.h.bf16 %v66
      %v164 = vunpack.c.l.bf16 %v67
      %v165 = vunpack.c.h.bf16 %v67
      %v166 = vunpack.c.l.bf16 %v68
      %v167 = vunpack.c.h.bf16 %v68
      %v168 = vunpack.c.l.bf16 %v69
      %v169 = vunpack.c.h.bf16 %v69
      %v170 = vunpack.c.l.bf16 %v70
      %v171 = vunpack.c.h.bf16 %v70
      %v172 = vunpack.c.l.bf16 %v71
      %v173 = vunpack.c.h.bf16 %v71
      %v174 = vunpack.c.l.bf16 %v72
      %v175 = vunpack.c.h.bf16 %v72
      %v176 = vunpack.c.l.bf16 %v73
      %v177 = vunpack.c.h.bf16 %v73
      %v178 = vunpack.c.l.bf16 %v74
      %v179 = vunpack.c.h.bf16 %v74
      %v180 = vunpack.c.l.bf16 %v75
      %v181 = vunpack.c.h.bf16 %v75
      %v182 = vunpack.c.l.bf16 %v76
      %v183 = vunpack.c.h.bf16 %v76
      %v184 = vunpack.c.l.bf16 %v77
      %v185 = vunpack.c.h.bf16 %v77
      %v186 = vunpack.c.l.bf16 %v78
      %v187 = vunpack.c.h.bf16 %v78
      %v188 = vunpack.c.l.bf16 %v79
      %v189 = vunpack.c.h.bf16 %v79
      %v190 = vunpack.c.l.bf16 %v80
      %v191 = vunpack.c.h.bf16 %v80
      %v192 = vunpack.c.l.bf16 %v81
      %v193 = vunpack.c.h.bf16 %v81
      %v194 = vunpack.c.l.bf16 %v82
      %v195 = vunpack.c.h.bf16 %v82
      %v196 = vunpack.c.l.bf16 %v83
      %v197 = vunpack.c.h.bf16 %v83
      %v198 = vunpack.c.l.bf16 %v84
      %v199 = vunpack.c.h.bf16 %v84
      %v200 = vunpack.c.l.bf16 %v85
      %v201 = vunpack.c.h.bf16 %v85
      %v202 = vunpack.c.l.bf16 %v86
      %v203 = vunpack.c.h.bf16 %v86
      %v204 = vunpack.c.l.bf16 %v87
      %v205 = vunpack.c.h.bf16 %v87
      %v206 = vunpack.c.l.bf16 %v88
      %v207 = vunpack.c.h.bf16 %v88
      %v208 = vunpack.c.l.bf16 %v89
      %v209 = vunpack.c.h.bf16 %v89
      %v210 = vunpack.c.l.bf16 %v90
      %v211 = vunpack.c.h.bf16 %v90
      %v212 = vunpack.c.l.bf16 %v91
      %v213 = vunpack.c.h.bf16 %v91
      %v214 = vunpack.c.l.bf16 %v92
      %v215 = vunpack.c.h.bf16 %v92
      %v216 = vunpack.c.l.bf16 %v93
      %v217 = vunpack.c.h.bf16 %v93
      %v218 = vunpack.c.l.bf16 %v94
      %v219 = vunpack.c.h.bf16 %v94
      %v220 = vunpack.c.l.bf16 %v95
      %v221 = vunpack.c.h.bf16 %v95
      %v222 = vunpack.c.l.bf16 %v96
      %v223 = vunpack.c.h.bf16 %v96
      %v224 = vunpack.c.l.bf16 %v97
      %v225 = vunpack.c.h.bf16 %v97
      %v226 = vmul.f32 %v98, %v98
      %v227 = vmul.f32 %v99, %v99
      %v228 = vmul.f32 %v100, %v100
      %v229 = vmul.f32 %v101, %v101
      %v230 = vmul.f32 %v102, %v102
      %v231 = vmul.f32 %v103, %v103
      %v232 = vmul.f32 %v104, %v104
      %v233 = vmul.f32 %v105, %v105
      %v234 = vmul.f32 %v106, %v106
      %v235 = vmul.f32 %v107, %v107
      %v236 = vmul.f32 %v108, %v108
      %v237 = vmul.f32 %v109, %v109
      %v238 = vmul.f32 %v110, %v110
      %v239 = vmul.f32 %v111, %v111
      %v240 = vmul.f32 %v112, %v112
      %v241 = vmul.f32 %v113, %v113
      %v242 = vmul.f32 %v114, %v114
      %v243 = vmul.f32 %v115, %v115
      %v244 = vmul.f32 %v116, %v116
      %v245 = vmul.f32 %v117, %v117
      %v246 = vmul.f32 %v118, %v118
      %v247 = vmul.f32 %v119, %v119
      %v248 = vmul.f32 %v120, %v120
      %v249 = vmul.f32 %v121, %v121
      %v250 = vmul.f32 %v122, %v122
      %v251 = vmul.f32 %v123, %v123
      %v252 = vmul.f32 %v124, %v124
      %v253 = vmul.f32 %v125, %v125
      %v254 = vmul.f32 %v126, %v126
      %v255 = vmul.f32 %v127, %v127
      %v256 = vmul.f32 %v128, %v128
      %v257 = vmul.f32 %v129, %v129
      %v258 = vmul.f32 %v130, %v130
      %v259 = vmul.f32 %v131, %v131
      %v260 = vmul.f32 %v132, %v132
      %v261 = vmul.f32 %v133, %v133
      %v262 = vmul.f32 %v134, %v134
      %v263 = vmul.f32 %v135, %v135
      %v264 = vmul.f32 %v136, %v136
      %v265 = vmul.f32 %v137, %v137
      %v266 = vmul.f32 %v138, %v138
      %v267 = vmul.f32 %v139, %v139
      %v268 = vmul.f32 %v140, %v140
      %v269 = vmul.f32 %v141, %v141
      %v270 = vmul.f32 %v142, %v142
      %v271 = vmul.f32 %v143, %v143
      %v272 = vmul.f32 %v144, %v144
      %v273 = vmul.f32 %v145, %v145
      %v274 = vmul.f32 %v146, %v146
      %v275 = vmul.f32 %v147, %v147
      %v276 = vmul.f32 %v148, %v148
      %v277 = vmul.f32 %v149, %v149
      %v278 = vmul.f32 %v150, %v150
      %v279 = vmul.f32 %v151, %v151
      %v280 = vmul.f32 %v152, %v152
      %v281 = vmul.f32 %v153, %v153
      %v282 = vmul.f32 %v154, %v154
      %v283 = vmul.f32 %v155, %v155
      %v284 = vmul.f32 %v156, %v156
      %v285 = vmul.f32 %v157, %v157
      %v286 = vmul.f32 %v158, %v158
      %v287 = vmul.f32 %v159, %v159
      %v288 = vmul.f32 %v160, %v160
      %v289 = vmul.f32 %v161, %v161
      %v290 = vmul.f32 %v162, %v162
      %v291 = vmul.f32 %v163, %v163
      %v292 = vmul.f32 %v164, %v164
      %v293 = vmul.f32 %v165, %v165
      %v294 = vmul.f32 %v166, %v166
      %v295 = vmul.f32 %v167, %v167
      %v296 = vmul.f32 %v168, %v168
      %v297 = vmul.f32 %v169, %v169
      %v298 = vmul.f32 %v170, %v170
      %v299 = vmul.f32 %v171, %v171
      %v300 = vmul.f32 %v172, %v172
      %v301 = vmul.f32 %v173, %v173
      %v302 = vmul.f32 %v174, %v174
      %v303 = vmul.f32 %v175, %v175
      %v304 = vmul.f32 %v176, %v176
      %v305 = vmul.f32 %v177, %v177
      %v306 = vmul.f32 %v178, %v178
      %v307 = vmul.f32 %v179, %v179
      %v308 = vmul.f32 %v180, %v180
      %v309 = vmul.f32 %v181, %v181
      %v310 = vmul.f32 %v182, %v182
      %v311 = vmul.f32 %v183, %v183
      %v312 = vmul.f32 %v184, %v184
      %v313 = vmul.f32 %v185, %v185
      %v314 = vmul.f32 %v186, %v186
      %v315 = vmul.f32 %v187, %v187
      %v316 = vmul.f32 %v188, %v188
      %v317 = vmul.f32 %v189, %v189
      %v318 = vmul.f32 %v190, %v190
      %v319 = vmul.f32 %v191, %v191
      %v320 = vmul.f32 %v192, %v192
      %v321 = vmul.f32 %v193, %v193
      %v322 = vmul.f32 %v194, %v194
      %v323 = vmul.f32 %v195, %v195
      %v324 = vmul.f32 %v196, %v196
      %v325 = vmul.f32 %v197, %v197
      %v326 = vmul.f32 %v198, %v198
      %v327 = vmul.f32 %v199, %v199
      %v328 = vmul.f32 %v200, %v200
      %v329 = vmul.f32 %v201, %v201
      %v330 = vmul.f32 %v202, %v202
      %v331 = vmul.f32 %v203, %v203
      %v332 = vmul.f32 %v204, %v204
      %v333 = vmul.f32 %v205, %v205
      %v334 = vmul.f32 %v206, %v206
      %v335 = vmul.f32 %v207, %v207
      %v336 = vmul.f32 %v208, %v208
      %v337 = vmul.f32 %v209, %v209
      %v338 = vmul.f32 %v210, %v210
      %v339 = vmul.f32 %v211, %v211
      %v340 = vmul.f32 %v212, %v212
      %v341 = vmul.f32 %v213, %v213
      %v342 = vmul.f32 %v214, %v214
      %v343 = vmul.f32 %v215, %v215
      %v344 = vmul.f32 %v216, %v216
      %v345 = vmul.f32 %v217, %v217
      %v346 = vmul.f32 %v218, %v218
      %v347 = vmul.f32 %v219, %v219
      %v348 = vmul.f32 %v220, %v220
      %v349 = vmul.f32 %v221, %v221
      %v350 = vmul.f32 %v222, %v222
      %v351 = vmul.f32 %v223, %v223
      %v352 = vmul.f32 %v224, %v224
      %v353 = vmul.f32 %v225, %v225
      %v354 = vadd.f32 %v226, %v234
      %v355 = vadd.f32 %v354, %v242
      %v356 = vadd.f32 %v355, %v250
      %v357 = vadd.f32 %v356, %v258
      %v358 = vadd.f32 %v357, %v266
      %v359 = vadd.f32 %v358, %v274
      %v360 = vadd.f32 %v359, %v282
      %v361 = vadd.f32 %v360, %v290
      %v362 = vadd.f32 %v361, %v298
      %v363 = vadd.f32 %v362, %v306
      %v364 = vadd.f32 %v363, %v314
      %v365 = vadd.f32 %v364, %v322
      %v366 = vadd.f32 %v365, %v330
      %v367 = vadd.f32 %v366, %v338
      %v368 = vadd.f32 %v367, %v346
      %v369 = vrot.slane %v368, 4
      %v370 = vadd.f32 %v368, %v369
      %v371 = vrot.slane %v370, 2
      %v372 = vadd.f32 %v370, %v371
      %v373 = vrot.slane %v372, 1
      %v374 = vadd.f32 %v372, %v373
      %v375 = vadd.f32 %v227, %v235
      %v376 = vadd.f32 %v375, %v243
      %v377 = vadd.f32 %v376, %v251
      %v378 = vadd.f32 %v377, %v259
      %v379 = vadd.f32 %v378, %v267
      %v380 = vadd.f32 %v379, %v275
      %v381 = vadd.f32 %v380, %v283
      %v382 = vadd.f32 %v381, %v291
      %v383 = vadd.f32 %v382, %v299
      %v384 = vadd.f32 %v383, %v307
      %v385 = vadd.f32 %v384, %v315
      %v386 = vadd.f32 %v385, %v323
      %v387 = vadd.f32 %v386, %v331
      %v388 = vadd.f32 %v387, %v339
      %v389 = vadd.f32 %v388, %v347
      %v390 = vrot.slane %v389, 4
      %v391 = vadd.f32 %v389, %v390
      %v392 = vrot.slane %v391, 2
      %v393 = vadd.f32 %v391, %v392
      %v394 = vrot.slane %v393, 1
      %v395 = vadd.f32 %v393, %v394
      %v396 = vadd.f32 %v228, %v236
      %v397 = vadd.f32 %v396, %v244
      %v398 = vadd.f32 %v397, %v252
      %v399 = vadd.f32 %v398, %v260
      %v400 = vadd.f32 %v399, %v268
      %v401 = vadd.f32 %v400, %v276
      %v402 = vadd.f32 %v401, %v284
      %v403 = vadd.f32 %v402, %v292
      %v404 = vadd.f32 %v403, %v300
      %v405 = vadd.f32 %v404, %v308
      %v406 = vadd.f32 %v405, %v316
      %v407 = vadd.f32 %v406, %v324
      %v408 = vadd.f32 %v407, %v332
      %v409 = vadd.f32 %v408, %v340
      %v410 = vadd.f32 %v409, %v348
      %v411 = vrot.slane %v410, 4
      %v412 = vadd.f32 %v410, %v411
      %v413 = vrot.slane %v412, 2
      %v414 = vadd.f32 %v412, %v413
      %v415 = vrot.slane %v414, 1
      %v416 = vadd.f32 %v414, %v415
      %v417 = vadd.f32 %v229, %v237
      %v418 = vadd.f32 %v417, %v245
      %v419 = vadd.f32 %v418, %v253
      %v420 = vadd.f32 %v419, %v261
      %v421 = vadd.f32 %v420, %v269
      %v422 = vadd.f32 %v421, %v277
      %v423 = vadd.f32 %v422, %v285
      %v424 = vadd.f32 %v423, %v293
      %v425 = vadd.f32 %v424, %v301
      %v426 = vadd.f32 %v425, %v309
      %v427 = vadd.f32 %v426, %v317
      %v428 = vadd.f32 %v427, %v325
      %v429 = vadd.f32 %v428, %v333
      %v430 = vadd.f32 %v429, %v341
      %v431 = vadd.f32 %v430, %v349
      %v432 = vrot.slane %v431, 4
      %v433 = vadd.f32 %v431, %v432
      %v434 = vrot.slane %v433, 2
      %v435 = vadd.f32 %v433, %v434
      %v436 = vrot.slane %v435, 1
      %v437 = vadd.f32 %v435, %v436
      %v438 = vadd.f32 %v230, %v238
      %v439 = vadd.f32 %v438, %v246
      %v440 = vadd.f32 %v439, %v254
      %v441 = vadd.f32 %v440, %v262
      %v442 = vadd.f32 %v441, %v270
      %v443 = vadd.f32 %v442, %v278
      %v444 = vadd.f32 %v443, %v286
      %v445 = vadd.f32 %v444, %v294
      %v446 = vadd.f32 %v445, %v302
      %v447 = vadd.f32 %v446, %v310
      %v448 = vadd.f32 %v447, %v318
      %v449 = vadd.f32 %v448, %v326
      %v450 = vadd.f32 %v449, %v334
      %v451 = vadd.f32 %v450, %v342
      %v452 = vadd.f32 %v451, %v350
      %v453 = vrot.slane %v452, 4
      %v454 = vadd.f32 %v452, %v453
      %v455 = vrot.slane %v454, 2
      %v456 = vadd.f32 %v454, %v455
      %v457 = vrot.slane %v456, 1
      %v458 = vadd.f32 %v456, %v457
      %v459 = vadd.f32 %v231, %v239
      %v460 = vadd.f32 %v459, %v247
      %v461 = vadd.f32 %v460, %v255
      %v462 = vadd.f32 %v461, %v263
      %v463 = vadd.f32 %v462, %v271
      %v464 = vadd.f32 %v463, %v279
      %v465 = vadd.f32 %v464, %v287
      %v466 = vadd.f32 %v465, %v295
      %v467 = vadd.f32 %v466, %v303
      %v468 = vadd.f32 %v467, %v311
      %v469 = vadd.f32 %v468, %v319
      %v470 = vadd.f32 %v469, %v327
      %v471 = vadd.f32 %v470, %v335
      %v472 = vadd.f32 %v471, %v343
      %v473 = vadd.f32 %v472, %v351
      %v474 = vrot.slane %v473, 4
      %v475 = vadd.f32 %v473, %v474
      %v476 = vrot.slane %v475, 2
      %v477 = vadd.f32 %v475, %v476
      %v478 = vrot.slane %v477, 1
      %v479 = vadd.f32 %v477, %v478
      %v480 = vadd.f32 %v232, %v240
      %v481 = vadd.f32 %v480, %v248
      %v482 = vadd.f32 %v481, %v256
      %v483 = vadd.f32 %v482, %v264
      %v484 = vadd.f32 %v483, %v272
      %v485 = vadd.f32 %v484, %v280
      %v486 = vadd.f32 %v485, %v288
      %v487 = vadd.f32 %v486, %v296
      %v488 = vadd.f32 %v487, %v304
      %v489 = vadd.f32 %v488, %v312
      %v490 = vadd.f32 %v489, %v320
      %v491 = vadd.f32 %v490, %v328
      %v492 = vadd.f32 %v491, %v336
      %v493 = vadd.f32 %v492, %v344
      %v494 = vadd.f32 %v493, %v352
      %v495 = vrot.slane %v494, 4
      %v496 = vadd.f32 %v494, %v495
      %v497 = vrot.slane %v496, 2
      %v498 = vadd.f32 %v496, %v497
      %v499 = vrot.slane %v498, 1
      %v500 = vadd.f32 %v498, %v499
      %v501 = vadd.f32 %v233, %v241
      %v502 = vadd.f32 %v501, %v249
      %v503 = vadd.f32 %v502, %v257
      %v504 = vadd.f32 %v503, %v265
      %v505 = vadd.f32 %v504, %v273
      %v506 = vadd.f32 %v505, %v281
      %v507 = vadd.f32 %v506, %v289
      %v508 = vadd.f32 %v507, %v297
      %v509 = vadd.f32 %v508, %v305
      %v510 = vadd.f32 %v509, %v313
      %v511 = vadd.f32 %v510, %v321
      %v512 = vadd.f32 %v511, %v329
      %v513 = vadd.f32 %v512, %v337
      %v514 = vadd.f32 %v513, %v345
      %v515 = vadd.f32 %v514, %v353
      %v516 = vrot.slane %v515, 4
      %v517 = vadd.f32 %v515, %v516
      %v518 = vrot.slane %v517, 2
      %v519 = vadd.f32 %v517, %v518
      %v520 = vrot.slane %v519, 1
      %v521 = vadd.f32 %v519, %v520
      %v522 = vrsqrt.pop %v374
      %v523 = vrsqrt.pop %v395
      %v524 = vrsqrt.pop %v416
      %v525 = vrsqrt.pop %v437
      %v526 = vrsqrt.pop %v458
      %v527 = vrsqrt.pop %v479
      %v528 = vrsqrt.pop %v500
      %v529 = vrsqrt.pop %v521
      %v538 = vcombine.low %v522, %v523
      %v539 = vcombine.low %v524, %v525
      %v540 = vcombine.low %v526, %v527
      %v541 = vcombine.low %v528, %v529
      %v543 = vunpack.c.l.s4 1966171168
      %v544 = vunpack.c.0.s8 %v543
      %v545 = vlaneseq
      %v546 = vshrl.u32 %v545, 7
      %v547 = vsub.s32 %v544, %v546
      %v548 = vrot.slane %v538, %v547
      %v550 = vunpack.c.l.s4 1966171168
      %v551 = vunpack.c.0.s8 %v550
      %v552 = vlaneseq
      %v553 = vshrl.u32 %v552, 7
      %v554 = vsub.s32 %v551, %v553
      %v555 = vrot.slane %v539, %v554
      %v557 = vunpack.c.l.s4 1966171168
      %v558 = vunpack.c.0.s8 %v557
      %v559 = vlaneseq
      %v560 = vshrl.u32 %v559, 7
      %v561 = vsub.s32 %v558, %v560
      %v562 = vrot.slane %v540, %v561
      %v564 = vunpack.c.l.s4 1966171168
      %v565 = vunpack.c.0.s8 %v564
      %v566 = vlaneseq
      %v567 = vshrl.u32 %v566, 7
      %v568 = vsub.s32 %v565, %v567
      %v569 = vrot.slane %v541, %v568
      %v570 = vcombine.low %v548, %v555
      %v571 = vcombine.low %v562, %v569
      %v573 = vunpack.c.l.s4 1966171168
      %v574 = vunpack.c.0.s8 %v573
      %v575 = vlaneseq
      %v576 = vshrl.u32 %v575, 7
      %v577 = vsub.s32 %v574, %v576
      %v578 = vrot.slane %v570, %v577
      %v580 = vunpack.c.l.s4 1966171168
      %v581 = vunpack.c.0.s8 %v580
      %v582 = vlaneseq
      %v583 = vshrl.u32 %v582, 7
      %v584 = vsub.s32 %v581, %v583
      %v585 = vrot.slane %v571, %v584
      %v586 = vcombine.low %v578, %v585
      %588 = vst [vmem:[#allocation2] sm:$0xff] %v586
    $region21: #{tpu_custom_call.1} parent=1 // pred_fallthru
      _
    %v589 = vld [vmem:[%s0] sm:$0xf]
    %v590 = vld [vmem:[#allocation3] sm:$0xff]
    %v591 = vld [vmem:[#allocation3 + $0x8] sm:$0xff]
    %v592 = vld [vmem:[#allocation3 + $0x10] sm:$0xff]
    %v593 = vld [vmem:[#allocation3 + $0x18] sm:$0xff]
    %v594 = vld [vmem:[#allocation3 + $0x20] sm:$0xff]
    %v595 = vld [vmem:[#allocation3 + $0x28] sm:$0xff]
    %v596 = vld [vmem:[#allocation3 + $0x30] sm:$0xff]
    %v597 = vld [vmem:[#allocation3 + $0x38] sm:$0xff]
    %v598 = vld [vmem:[#allocation3 + $0x40] sm:$0xff]
    %v599 = vld [vmem:[#allocation3 + $0x48] sm:$0xff]
    %v600 = vld [vmem:[#allocation3 + $0x50] sm:$0xff]
    %v601 = vld [vmem:[#allocation3 + $0x58] sm:$0xff]
    %v602 = vld [vmem:[#allocation3 + $0x60] sm:$0xff]
    %v603 = vld [vmem:[#allocation3 + $0x68] sm:$0xff]
    %v604 = vld [vmem:[#allocation3 + $0x70] sm:$0xff]
    %v605 = vld [vmem:[#allocation3 + $0x78] sm:$0xff]
    %v606 = vld [vmem:[#allocation3 + $0x80] sm:$0xff]
    %v607 = vld [vmem:[#allocation3 + $0x88] sm:$0xff]
    %v608 = vld [vmem:[#allocation3 + $0x90] sm:$0xff]
    %v609 = vld [vmem:[#allocation3 + $0x98] sm:$0xff]
    %v610 = vld [vmem:[#allocation3 + $0xa0] sm:$0xff]
    %v611 = vld [vmem:[#allocation3 + $0xa8] sm:$0xff]
    %v612 = vld [vmem:[#allocation3 + $0xb0] sm:$0xff]
    %v613 = vld [vmem:[#allocation3 + $0xb8] sm:$0xff]
    %v614 = vld [vmem:[#allocation3 + $0xc0] sm:$0xff]
    %v615 = vld [vmem:[#allocation3 + $0xc8] sm:$0xff]
    %v616 = vld [vmem:[#allocation3 + $0xd0] sm:$0xff]
    %v617 = vld [vmem:[#allocation3 + $0xd8] sm:$0xff]
    %v618 = vld [vmem:[#allocation3 + $0xe0] sm:$0xff]
    %v619 = vld [vmem:[#allocation3 + $0xe8] sm:$0xff]
    %v620 = vld [vmem:[#allocation3 + $0xf0] sm:$0xff]
    %v621 = vld [vmem:[#allocation3 + $0xf8] sm:$0xff]
    %v622 = vld [vmem:[#allocation3 + $0x100] sm:$0xff]
    %v623 = vld [vmem:[#allocation3 + $0x108] sm:$0xff]
    %v624 = vld [vmem:[#allocation3 + $0x110] sm:$0xff]
    %v625 = vld [vmem:[#allocation3 + $0x118] sm:$0xff]
    %v626 = vld [vmem:[#allocation3 + $0x120] sm:$0xff]
    %v627 = vld [vmem:[#allocation3 + $0x128] sm:$0xff]
    %v628 = vld [vmem:[#allocation3 + $0x130] sm:$0xff]
    %v629 = vld [vmem:[#allocation3 + $0x138] sm:$0xff]
    %v630 = vld [vmem:[#allocation3 + $0x140] sm:$0xff]
    %v631 = vld [vmem:[#allocation3 + $0x148] sm:$0xff]
    %v632 = vld [vmem:[#allocation3 + $0x150] sm:$0xff]
    %v633 = vld [vmem:[#allocation3 + $0x158] sm:$0xff]
    %v634 = vld [vmem:[#allocation3 + $0x160] sm:$0xff]
    %v635 = vld [vmem:[#allocation3 + $0x168] sm:$0xff]
    %v636 = vld [vmem:[#allocation3 + $0x170] sm:$0xff]
    %v637 = vld [vmem:[#allocation3 + $0x178] sm:$0xff]
    %v638 = vld [vmem:[#allocation3 + $0x180] sm:$0xff]
    %v639 = vld [vmem:[#allocation3 + $0x188] sm:$0xff]
    %v640 = vld [vmem:[#allocation3 + $0x190] sm:$0xff]
    %v641 = vld [vmem:[#allocation3 + $0x198] sm:$0xff]
    %v642 = vld [vmem:[#allocation3 + $0x1a0] sm:$0xff]
    %v643 = vld [vmem:[#allocation3 + $0x1a8] sm:$0xff]
    %v644 = vld [vmem:[#allocation3 + $0x1b0] sm:$0xff]
    %v645 = vld [vmem:[#allocation3 + $0x1b8] sm:$0xff]
    %v646 = vld [vmem:[#allocation3 + $0x1c0] sm:$0xff]
    %v647 = vld [vmem:[#allocation3 + $0x1c8] sm:$0xff]
    %v648 = vld [vmem:[#allocation3 + $0x1d0] sm:$0xff]
    %v649 = vld [vmem:[#allocation3 + $0x1d8] sm:$0xff]
    %v650 = vld [vmem:[#allocation3 + $0x1e0] sm:$0xff]
    %v651 = vld [vmem:[#allocation3 + $0x1e8] sm:$0xff]
    %v652 = vld [vmem:[#allocation3 + $0x1f0] sm:$0xff]
    %v653 = vld [vmem:[#allocation3 + $0x1f8] sm:$0xff]
    %v718 = vunpack.c.l.b16 %v590
    %v719 = vunpack.c.h.b16 %v590
    %v720 = vunpack.c.l.b16 %v591
    %v721 = vunpack.c.h.b16 %v591
    %v722 = vunpack.c.l.b16 %v592
    %v723 = vunpack.c.h.b16 %v592
    %v724 = vunpack.c.l.b16 %v593
    %v725 = vunpack.c.h.b16 %v593
    %v726 = vunpack.c.l.b16 %v594
    %v727 = vunpack.c.h.b16 %v594
    %v728 = vunpack.c.l.b16 %v595
    %v729 = vunpack.c.h.b16 %v595
    %v730 = vunpack.c.l.b16 %v596
    %v731 = vunpack.c.h.b16 %v596
    %v732 = vunpack.c.l.b16 %v597
    %v733 = vunpack.c.h.b16 %v597
    %v734 = vunpack.c.l.b16 %v598
    %v735 = vunpack.c.h.b16 %v598
    %v736 = vunpack.c.l.b16 %v599
    %v737 = vunpack.c.h.b16 %v599
    %v738 = vunpack.c.l.b16 %v600
    %v739 = vunpack.c.h.b16 %v600
    %v740 = vunpack.c.l.b16 %v601
    %v741 = vunpack.c.h.b16 %v601
    %v742 = vunpack.c.l.b16 %v602
    %v743 = vunpack.c.h.b16 %v602
    %v744 = vunpack.c.l.b16 %v603
    %v745 = vunpack.c.h.b16 %v603
    %v746 = vunpack.c.l.b16 %v604
    %v747 = vunpack.c.h.b16 %v604
    %v748 = vunpack.c.l.b16 %v605
    %v749 = vunpack.c.h.b16 %v605
    %v750 = vunpack.c.l.b16 %v606
    %v751 = vunpack.c.h.b16 %v606
    %v752 = vunpack.c.l.b16 %v607
    %v753 = vunpack.c.h.b16 %v607
    %v754 = vunpack.c.l.b16 %v608
    %v755 = vunpack.c.h.b16 %v608
    %v756 = vunpack.c.l.b16 %v609
    %v757 = vunpack.c.h.b16 %v609
    %v758 = vunpack.c.l.b16 %v610
    %v759 = vunpack.c.h.b16 %v610
    %v760 = vunpack.c.l.b16 %v611
    %v761 = vunpack.c.h.b16 %v611
    %v762 = vunpack.c.l.b16 %v612
    %v763 = vunpack.c.h.b16 %v612
    %v764 = vunpack.c.l.b16 %v613
    %v765 = vunpack.c.h.b16 %v613
    %v766 = vunpack.c.l.b16 %v614
    %v767 = vunpack.c.h.b16 %v614
    %v768 = vunpack.c.l.b16 %v615
    %v769 = vunpack.c.h.b16 %v615
    %v770 = vunpack.c.l.b16 %v616
    %v771 = vunpack.c.h.b16 %v616
    %v772 = vunpack.c.l.b16 %v617
    %v773 = vunpack.c.h.b16 %v617
    %v774 = vunpack.c.l.b16 %v618
    %v775 = vunpack.c.h.b16 %v618
    %v776 = vunpack.c.l.b16 %v619
    %v777 = vunpack.c.h.b16 %v619
    %v778 = vunpack.c.l.b16 %v620
    %v779 = vunpack.c.h.b16 %v620
    %v780 = vunpack.c.l.b16 %v621
    %v781 = vunpack.c.h.b16 %v621
    %v782 = vunpack.c.l.b16 %v622
    %v783 = vunpack.c.h.b16 %v622
    %v784 = vunpack.c.l.b16 %v623
    %v785 = vunpack.c.h.b16 %v623
    %v786 = vunpack.c.l.b16 %v624
    %v787 = vunpack.c.h.b16 %v624
    %v788 = vunpack.c.l.b16 %v625
    %v789 = vunpack.c.h.b16 %v625
    %v790 = vunpack.c.l.b16 %v626
    %v791 = vunpack.c.h.b16 %v626
    %v792 = vunpack.c.l.b16 %v627
    %v793 = vunpack.c.h.b16 %v627
    %v794 = vunpack.c.l.b16 %v628
    %v795 = vunpack.c.h.b16 %v628
    %v796 = vunpack.c.l.b16 %v629
    %v797 = vunpack.c.h.b16 %v629
    %v798 = vunpack.c.l.b16 %v630
    %v799 = vunpack.c.h.b16 %v630
    %v800 = vunpack.c.l.b16 %v631
    %v801 = vunpack.c.h.b16 %v631
    %v802 = vunpack.c.l.b16 %v632
    %v803 = vunpack.c.h.b16 %v632
    %v804 = vunpack.c.l.b16 %v633
    %v805 = vunpack.c.h.b16 %v633
    %v806 = vunpack.c.l.b16 %v634
    %v807 = vunpack.c.h.b16 %v634
    %v808 = vunpack.c.l.b16 %v635
    %v809 = vunpack.c.h.b16 %v635
    %v810 = vunpack.c.l.b16 %v636
    %v811 = vunpack.c.h.b16 %v636
    %v812 = vunpack.c.l.b16 %v637
    %v813 = vunpack.c.h.b16 %v637
    %v814 = vunpack.c.l.b16 %v638
    %v815 = vunpack.c.h.b16 %v638
    %v816 = vunpack.c.l.b16 %v639
    %v817 = vunpack.c.h.b16 %v639
    %v818 = vunpack.c.l.b16 %v640
    %v819 = vunpack.c.h.b16 %v640
    %v820 = vunpack.c.l.b16 %v641
    %v821 = vunpack.c.h.b16 %v641
    %v822 = vunpack.c.l.b16 %v642
    %v823 = vunpack.c.h.b16 %v642
    %v824 = vunpack.c.l.b16 %v643
    %v825 = vunpack.c.h.b16 %v643
    %v826 = vunpack.c.l.b16 %v644
    %v827 = vunpack.c.h.b16 %v644
    %v828 = vunpack.c.l.b16 %v645
    %v829 = vunpack.c.h.b16 %v645
    %v830 = vunpack.c.l.b16 %v646
    %v831 = vunpack.c.h.b16 %v646
    %v832 = vunpack.c.l.b16 %v647
    %v833 = vunpack.c.h.b16 %v647
    %v834 = vunpack.c.l.b16 %v648
    %v835 = vunpack.c.h.b16 %v648
    %v836 = vunpack.c.l.b16 %v649
    %v837 = vunpack.c.h.b16 %v649
    %v838 = vunpack.c.l.b16 %v650
    %v839 = vunpack.c.h.b16 %v650
    %v840 = vunpack.c.l.b16 %v651
    %v841 = vunpack.c.h.b16 %v651
    %v842 = vunpack.c.l.b16 %v652
    %v843 = vunpack.c.h.b16 %v652
    %v844 = vunpack.c.l.b16 %v653
    %v845 = vunpack.c.h.b16 %v653
    %v846 = vpack.c.b16 %v726, %v718
    %v847 = vpack.c.b16 %v727, %v719
    %v848 = vpack.c.b16 %v728, %v720
    %v849 = vpack.c.b16 %v729, %v721
    %v850 = vpack.c.b16 %v730, %v722
    %v851 = vpack.c.b16 %v731, %v723
    %v852 = vpack.c.b16 %v732, %v724
    %v853 = vpack.c.b16 %v733, %v725
    %v854 = vpack.c.b16 %v742, %v734
    %v855 = vpack.c.b16 %v743, %v735
    %v856 = vpack.c.b16 %v744, %v736
    %v857 = vpack.c.b16 %v745, %v737
    %v858 = vpack.c.b16 %v746, %v738
    %v859 = vpack.c.b16 %v747, %v739
    %v860 = vpack.c.b16 %v748, %v740
    %v861 = vpack.c.b16 %v749, %v741
    %v862 = vpack.c.b16 %v758, %v750
    %v863 = vpack.c.b16 %v759, %v751
    %v864 = vpack.c.b16 %v760, %v752
    %v865 = vpack.c.b16 %v761, %v753
    %v866 = vpack.c.b16 %v762, %v754
    %v867 = vpack.c.b16 %v763, %v755
    %v868 = vpack.c.b16 %v764, %v756
    %v869 = vpack.c.b16 %v765, %v757
    %v870 = vpack.c.b16 %v774, %v766
    %v871 = vpack.c.b16 %v775, %v767
    %v872 = vpack.c.b16 %v776, %v768
    %v873 = vpack.c.b16 %v777, %v769
    %v874 = vpack.c.b16 %v778, %v770
    %v875 = vpack.c.b16 %v779, %v771
    %v876 = vpack.c.b16 %v780, %v772
    %v877 = vpack.c.b16 %v781, %v773
    %v878 = vpack.c.b16 %v790, %v782
    %v879 = vpack.c.b16 %v791, %v783
    %v880 = vpack.c.b16 %v792, %v784
    %v881 = vpack.c.b16 %v793, %v785
    %v882 = vpack.c.b16 %v794, %v786
    %v883 = vpack.c.b16 %v795, %v787
    %v884 = vpack.c.b16 %v796, %v788
    %v885 = vpack.c.b16 %v797, %v789
    %v886 = vpack.c.b16 %v806, %v798
    %v887 = vpack.c.b16 %v807, %v799
    %v888 = vpack.c.b16 %v808, %v800
    %v889 = vpack.c.b16 %v809, %v801
    %v890 = vpack.c.b16 %v810, %v802
    %v891 = vpack.c.b16 %v811, %v803
    %v892 = vpack.c.b16 %v812, %v804
    %v893 = vpack.c.b16 %v813, %v805
    %v894 = vpack.c.b16 %v822, %v814
    %v895 = vpack.c.b16 %v823, %v815
    %v896 = vpack.c.b16 %v824, %v816
    %v897 = vpack.c.b16 %v825, %v817
    %v898 = vpack.c.b16 %v826, %v818
    %v899 = vpack.c.b16 %v827, %v819
    %v900 = vpack.c.b16 %v828, %v820
    %v901 = vpack.c.b16 %v829, %v821
    %v902 = vpack.c.b16 %v838, %v830
    %v903 = vpack.c.b16 %v839, %v831
    %v904 = vpack.c.b16 %v840, %v832
    %v905 = vpack.c.b16 %v841, %v833
    %v906 = vpack.c.b16 %v842, %v834
    %v907 = vpack.c.b16 %v843, %v835
    %v908 = vpack.c.b16 %v844, %v836
    %v909 = vpack.c.b16 %v845, %v837
    %974 = vmatprep.subr.bf16.mxu0 %v847
    %975 = vmatpush1.bf16.msra.mxu0 %v846
    %976 = vmatprep.subr.bf16.mxu0 %v855
    %977 = vmatpush1.bf16.msra.mxu0 %v854
    %978 = vmatprep.subr.bf16.mxu0 %v863
    %979 = vmatpush1.bf16.msra.mxu0 %v862
    %980 = vmatprep.subr.bf16.mxu0 %v871
    %981 = vmatpush1.bf16.msra.mxu0 %v870
    %982 = vmatprep.subr.bf16.mxu0 %v879
    %983 = vmatpush1.bf16.msra.mxu0 %v878
    %984 = vmatprep.subr.bf16.mxu0 %v887
    %985 = vmatpush1.bf16.msra.mxu0 %v886
    %986 = vmatprep.subr.bf16.mxu0 %v895
    %987 = vmatpush1.bf16.msra.mxu0 %v894
    %988 = vmatprep.subr.bf16.mxu0 %v903
    %989 = vmatpush1.bf16.msra.mxu0 %v902
    %990 = vmatprep.subr.bf16.mxu0 0
    %991 = vmatpush1.bf16.msra.mxu0 0
    %992 = vmatprep.subr.bf16.mxu0 0
    %993 = vmatpush1.bf16.msra.mxu0 0
    %994 = vmatprep.subr.bf16.mxu0 0
    %995 = vmatpush1.bf16.msra.mxu0 0
    %996 = vmatprep.subr.bf16.mxu0 0
    %997 = vmatpush1.bf16.msra.mxu0 0
    %998 = vmatprep.subr.bf16.mxu0 0
    %999 = vmatpush1.bf16.msra.mxu0 0
    %1000 = vmatprep.subr.bf16.mxu0 0
    %1001 = vmatpush1.bf16.msra.mxu0 0
    %1002 = vmatprep.subr.bf16.mxu0 0
    %1003 = vmatpush1.bf16.msra.mxu0 0
    %1004 = vmatprep.subr.bf16.mxu0 0
    %1005 = vmatpush1.bf16.msra.mxu0 0
    %1006 = vmatprep.mubr.bf16.mxu0 0
    %1007 = vmatmul.mubr.bf16.gmra.mrb[0].mxu0 %v589
    %v1008 = vpop.f32.mrb[0].mxu0
    %v1009 = vadd.f32 0.0, %v1008
    %v1010 = vpop.f32.mrb[0].mxu0
    %v1011 = vadd.f32 0.0, %v1010
    %v1012 = vpop.f32.mrb[0].mxu0
    %v1013 = vpop.f32.mrb[0].mxu0
    %1014 = vdwg.mxu0
    %1015 = vmatprep.subr.bf16.mxu0 %v849
    %1016 = vmatpush1.bf16.msra.mxu0 %v848
    %1017 = vmatprep.subr.bf16.mxu0 %v857
    %1018 = vmatpush1.bf16.msra.mxu0 %v856
    %1019 = vmatprep.subr.bf16.mxu0 %v865
    %1020 = vmatpush1.bf16.msra.mxu0 %v864
    %1021 = vmatprep.subr.bf16.mxu0 %v873
    %1022 = vmatpush1.bf16.msra.mxu0 %v872
    %1023 = vmatprep.subr.bf16.mxu0 %v881
    %1024 = vmatpush1.bf16.msra.mxu0 %v880
    %1025 = vmatprep.subr.bf16.mxu0 %v889
    %1026 = vmatpush1.bf16.msra.mxu0 %v888
    %1027 = vmatprep.subr.bf16.mxu0 %v897
    %1028 = vmatpush1.bf16.msra.mxu0 %v896
    %1029 = vmatprep.subr.bf16.mxu0 %v905
    %1030 = vmatpush1.bf16.msra.mxu0 %v904
    %1031 = vmatprep.subr.bf16.mxu0 0
    %1032 = vmatpush1.bf16.msra.mxu0 0
    %1033 = vmatprep.subr.bf16.mxu0 0
    %1034 = vmatpush1.bf16.msra.mxu0 0
    %1035 = vmatprep.subr.bf16.mxu0 0
    %1036 = vmatpush1.bf16.msra.mxu0 0
    %1037 = vmatprep.subr.bf16.mxu0 0
    %1038 = vmatpush1.bf16.msra.mxu0 0
    %1039 = vmatprep.subr.bf16.mxu0 0
    %1040 = vmatpush1.bf16.msra.mxu0 0
    %1041 = vmatprep.subr.bf16.mxu0 0
    %1042 = vmatpush1.bf16.msra.mxu0 0
    %1043 = vmatprep.subr.bf16.mxu0 0
    %1044 = vmatpush1.bf16.msra.mxu0 0
    %1045 = vmatprep.subr.bf16.mxu0 0
    %1046 = vmatpush1.bf16.msra.mxu0 0
    %1047 = vmatprep.mubr.bf16.mxu0 0
    %1048 = vmatmul.mubr.bf16.gmra.mrb[0].mxu0 %v589
    %v1049 = vpop.f32.mrb[0].mxu0
    %v1050 = vadd.f32 0.0, %v1049
    %v1051 = vpop.f32.mrb[0].mxu0
    %v1052 = vadd.f32 0.0, %v1051
    %v1053 = vpop.f32.mrb[0].mxu0
    %v1054 = vpop.f32.mrb[0].mxu0
    %1055 = vdwg.mxu0
    %1056 = vmatprep.subr.bf16.mxu0 %v851
    %1057 = vmatpush1.bf16.msra.mxu0 %v850
    %1058 = vmatprep.subr.bf16.mxu0 %v859
    %1059 = vmatpush1.bf16.msra.mxu0 %v858
    %1060 = vmatprep.subr.bf16.mxu0 %v867
    %1061 = vmatpush1.bf16.msra.mxu0 %v866
    %1062 = vmatprep.subr.bf16.mxu0 %v875
    %1063 = vmatpush1.bf16.msra.mxu0 %v874
    %1064 = vmatprep.subr.bf16.mxu0 %v883
    %1065 = vmatpush1.bf16.msra.mxu0 %v882
    %1066 = vmatprep.subr.bf16.mxu0 %v891
    %1067 = vmatpush1.bf16.msra.mxu0 %v890
    %1068 = vmatprep.subr.bf16.mxu0 %v899
    %1069 = vmatpush1.bf16.msra.mxu0 %v898
    %1070 = vmatprep.subr.bf16.mxu0 %v907
    %1071 = vmatpush1.bf16.msra.mxu0 %v906
    %1072 = vmatprep.subr.bf16.mxu0 0
    %1073 = vmatpush1.bf16.msra.mxu0 0
    %1074 = vmatprep.subr.bf16.mxu0 0
    %1075 = vmatpush1.bf16.msra.mxu0 0
    %1076 = vmatprep.subr.bf16.mxu0 0
    %1077 = vmatpush1.bf16.msra.mxu0 0
    %1078 = vmatprep.subr.bf16.mxu0 0
    %1079 = vmatpush1.bf16.msra.mxu0 0
    %1080 = vmatprep.subr.bf16.mxu0 0
    %1081 = vmatpush1.bf16.msra.mxu0 0
    %1082 = vmatprep.subr.bf16.mxu0 0
    %1083 = vmatpush1.bf16.msra.mxu0 0
    %1084 = vmatprep.subr.bf16.mxu0 0
    %1085 = vmatpush1.bf16.msra.mxu0 0
    %1086 = vmatprep.subr.bf16.mxu0 0
    %1087 = vmatpush1.bf16.msra.mxu0 0
    %1088 = vmatprep.mubr.bf16.mxu0 0
    %1089 = vmatmul.mubr.bf16.gmra.mrb[0].mxu0 %v589
    %v1090 = vpop.f32.mrb[0].mxu0
    %v1091 = vadd.f32 0.0, %v1090
    %v1092 = vpop.f32.mrb[0].mxu0
    %v1093 = vadd.f32 0.0, %v1092
    %v1094 = vpop.f32.mrb[0].mxu0
    %v1095 = vpop.f32.mrb[0].mxu0
    %1096 = vdwg.mxu0
    %1097 = vmatprep.subr.bf16.mxu0 %v853
    %1098 = vmatpush1.bf16.msra.mxu0 %v852
    %1099 = vmatprep.subr.bf16.mxu0 %v861
    %1100 = vmatpush1.bf16.msra.mxu0 %v860
    %1101 = vmatprep.subr.bf16.mxu0 %v869
    %1102 = vmatpush1.bf16.msra.mxu0 %v868
    %1103 = vmatprep.subr.bf16.mxu0 %v877
    %1104 = vmatpush1.bf16.msra.mxu0 %v876
    %1105 = vmatprep.subr.bf16.mxu0 %v885
    %1106 = vmatpush1.bf16.msra.mxu0 %v884
    %1107 = vmatprep.subr.bf16.mxu0 %v893
    %1108 = vmatpush1.bf16.msra.mxu0 %v892
    %1109 = vmatprep.subr.bf16.mxu0 %v901
    %1110 = vmatpush1.bf16.msra.mxu0 %v900
    %1111 = vmatprep.subr.bf16.mxu0 %v909
    %1112 = vmatpush1.bf16.msra.mxu0 %v908
    %1113 = vmatprep.subr.bf16.mxu0 0
    %1114 = vmatpush1.bf16.msra.mxu0 0
    %1115 = vmatprep.subr.bf16.mxu0 0
    %1116 = vmatpush1.bf16.msra.mxu0 0
    %1117 = vmatprep.subr.bf16.mxu0 0
    %1118 = vmatpush1.bf16.msra.mxu0 0
    %1119 = vmatprep.subr.bf16.mxu0 0
    %1120 = vmatpush1.bf16.msra.mxu0 0
    %1121 = vmatprep.subr.bf16.mxu0 0
    %1122 = vmatpush1.bf16.msra.mxu0 0
    %1123 = vmatprep.subr.bf16.mxu0 0
    %1124 = vmatpush1.bf16.msra.mxu0 0
    %1125 = vmatprep.subr.bf16.mxu0 0
    %1126 = vmatpush1.bf16.msra.mxu0 0
    %1127 = vmatprep.subr.bf16.mxu0 0
    %1128 = vmatpush1.bf16.msra.mxu0 0
    %1129 = vmatprep.mubr.bf16.mxu0 0
    %1130 = vmatmul.mubr.bf16.gmra.mrb[0].mxu0 %v589
    %v1131 = vpop.f32.mrb[0].mxu0
    %v1132 = vadd.f32 0.0, %v1131
    %v1133 = vpop.f32.mrb[0].mxu0
    %v1134 = vadd.f32 0.0, %v1133
    %v1135 = vpop.f32.mrb[0].mxu0
    %v1136 = vpop.f32.mrb[0].mxu0
    %1137 = vdwg.mxu0
    %v1138 = vld [vmem:[#allocation2] sm:$0xff]
    %v1140 = vlaneseq
    %v1141 = vshrl.u32 %v1140, 7
    %v1142 = vsub.s32 0, %v1141
    %v1143 = vrot.slane %v1138, %v1142
    %v1144 = vlaneseq
    %v1145 = vshrl.u32 %v1144, 7
    %v1146 = vsub.s32 1, %v1145
    %v1147 = vrot.slane %v1138, %v1146
    %v1148 = vlaneseq
    %v1149 = vshrl.u32 %v1148, 7
    %v1150 = vsub.s32 2, %v1149
    %v1151 = vrot.slane %v1138, %v1150
    %v1152 = vlaneseq
    %v1153 = vshrl.u32 %v1152, 7
    %v1154 = vsub.s32 3, %v1153
    %v1155 = vrot.slane %v1138, %v1154
    %v1156 = vlaneseq
    %v1157 = vshrl.u32 %v1156, 7
    %v1158 = vsub.s32 4, %v1157
    %v1159 = vrot.slane %v1138, %v1158
    %v1160 = vlaneseq
    %v1161 = vshrl.u32 %v1160, 7
    %v1162 = vsub.s32 5, %v1161
    %v1163 = vrot.slane %v1138, %v1162
    %v1164 = vlaneseq
    %v1165 = vshrl.u32 %v1164, 7
    %v1166 = vsub.s32 6, %v1165
    %v1167 = vrot.slane %v1138, %v1166
    %v1168 = vlaneseq
    %v1169 = vshrl.u32 %v1168, 7
    %v1170 = vsub.s32 7, %v1169
    %v1171 = vrot.slane %v1138, %v1170
    %v1180 = vmul.f32 %v1009, %v1143
    %v1181 = vmul.f32 %v1011, %v1147
    %v1182 = vmul.f32 %v1050, %v1151
    %v1183 = vmul.f32 %v1052, %v1155
    %v1184 = vmul.f32 %v1091, %v1159
    %v1185 = vmul.f32 %v1093, %v1163
    %v1186 = vmul.f32 %v1132, %v1167
    %v1187 = vmul.f32 %v1134, %v1171
    %v1188 = vmax.f32 %v1180, -1.0
    %v1189 = vmax.f32 %v1181, -1.0
    %v1190 = vmax.f32 %v1182, -1.0
    %v1191 = vmax.f32 %v1183, -1.0
    %v1192 = vmax.f32 %v1184, -1.0
    %v1193 = vmax.f32 %v1185, -1.0
    %v1194 = vmax.f32 %v1186, -1.0
    %v1195 = vmax.f32 %v1187, -1.0
    %v1196 = vmin.f32 %v1188, 1.0
    %v1197 = vmin.f32 %v1189, 1.0
    %v1198 = vmin.f32 %v1190, 1.0
    %v1199 = vmin.f32 %v1191, 1.0
    %v1200 = vmin.f32 %v1192, 1.0
    %v1201 = vmin.f32 %v1193, 1.0
    %v1202 = vmin.f32 %v1194, 1.0
    %v1203 = vmin.f32 %v1195, 1.0
    %v1204 = vmul.f32 %v1196, %v1196
    %v1205 = vmul.f32 %v1197, %v1197
    %v1206 = vmul.f32 %v1198, %v1198
    %v1207 = vmul.f32 %v1199, %v1199
    %v1208 = vmul.f32 %v1200, %v1200
    %v1209 = vmul.f32 %v1201, %v1201
    %v1210 = vmul.f32 %v1202, %v1202
    %v1211 = vmul.f32 %v1203, %v1203
    %v1212 = vsub.f32 1.0, %v1204
    %v1213 = vsub.f32 1.0, %v1205
    %v1214 = vsub.f32 1.0, %v1206
    %v1215 = vsub.f32 1.0, %v1207
    %v1216 = vsub.f32 1.0, %v1208
    %v1217 = vsub.f32 1.0, %v1209
    %v1218 = vsub.f32 1.0, %v1210
    %v1219 = vsub.f32 1.0, %v1211
    %v1220 = vmax.f32 %v1212, 0.0
    %v1221 = vmax.f32 %v1213, 0.0
    %v1222 = vmax.f32 %v1214, 0.0
    %v1223 = vmax.f32 %v1215, 0.0
    %v1224 = vmax.f32 %v1216, 0.0
    %v1225 = vmax.f32 %v1217, 0.0
    %v1226 = vmax.f32 %v1218, 0.0
    %v1227 = vmax.f32 %v1219, 0.0
    %v1228 = vrsqrt.pop %v1220
    %v1229 = vmul.f32 %v1220, %v1228
    %vm1230 = vcmp.eq.f32.partialorder %v1220, inf
    %v1231 = vsel %vm1230, %v1220, %v1229
    %vm1232 = vcmp.eq.f32.partialorder %v1220, 0.0
    %v1233 = vand.u32 %v1220, 2147483648
    %v1234 = vsel %vm1232, %v1233, %v1231
    %v1235 = vrsqrt.pop %v1221
    %v1236 = vmul.f32 %v1221, %v1235
    %vm1237 = vcmp.eq.f32.partialorder %v1221, inf
    %v1238 = vsel %vm1237, %v1221, %v1236
    %vm1239 = vcmp.eq.f32.partialorder %v1221, 0.0
    %v1240 = vand.u32 %v1221, 2147483648
    %v1241 = vsel %vm1239, %v1240, %v1238
    %v1242 = vrsqrt.pop %v1222
    %v1243 = vmul.f32 %v1222, %v1242
    %vm1244 = vcmp.eq.f32.partialorder %v1222, inf
    %v1245 = vsel %vm1244, %v1222, %v1243
    %vm1246 = vcmp.eq.f32.partialorder %v1222, 0.0
    %v1247 = vand.u32 %v1222, 2147483648
    %v1248 = vsel %vm1246, %v1247, %v1245
    %v1249 = vrsqrt.pop %v1223
    %v1250 = vmul.f32 %v1223, %v1249
    %vm1251 = vcmp.eq.f32.partialorder %v1223, inf
    %v1252 = vsel %vm1251, %v1223, %v1250
    %vm1253 = vcmp.eq.f32.partialorder %v1223, 0.0
    %v1254 = vand.u32 %v1223, 2147483648
    %v1255 = vsel %vm1253, %v1254, %v1252
    %v1256 = vrsqrt.pop %v1224
    %v1257 = vmul.f32 %v1224, %v1256
    %vm1258 = vcmp.eq.f32.partialorder %v1224, inf
    %v1259 = vsel %vm1258, %v1224, %v1257
    %vm1260 = vcmp.eq.f32.partialorder %v1224, 0.0
    %v1261 = vand.u32 %v1224, 2147483648
    %v1262 = vsel %vm1260, %v1261, %v1259
    %v1263 = vrsqrt.pop %v1225
    %v1264 = vmul.f32 %v1225, %v1263
    %vm1265 = vcmp.eq.f32.partialorder %v1225, inf
    %v1266 = vsel %vm1265, %v1225, %v1264
    %vm1267 = vcmp.eq.f32.partialorder %v1225, 0.0
    %v1268 = vand.u32 %v1225, 2147483648
    %v1269 = vsel %vm1267, %v1268, %v1266
    %v1270 = vrsqrt.pop %v1226
    %v1271 = vmul.f32 %v1226, %v1270
    %vm1272 = vcmp.eq.f32.partialorder %v1226, inf
    %v1273 = vsel %vm1272, %v1226, %v1271
    %vm1274 = vcmp.eq.f32.partialorder %v1226, 0.0
    %v1275 = vand.u32 %v1226, 2147483648
    %v1276 = vsel %vm1274, %v1275, %v1273
    %v1277 = vrsqrt.pop %v1227
    %v1278 = vmul.f32 %v1227, %v1277
    %vm1279 = vcmp.eq.f32.partialorder %v1227, inf
    %v1280 = vsel %vm1279, %v1227, %v1278
    %vm1281 = vcmp.eq.f32.partialorder %v1227, 0.0
    %v1282 = vand.u32 %v1227, 2147483648
    %v1283 = vsel %vm1281, %v1282, %v1280
    %v1284 = vmul.f32 %v1196, 0.87758255
    %v1285 = vmul.f32 %v1197, 0.87758255
    %v1286 = vmul.f32 %v1198, 0.87758255
    %v1287 = vmul.f32 %v1199, 0.87758255
    %v1288 = vmul.f32 %v1200, 0.87758255
    %v1289 = vmul.f32 %v1201, 0.87758255
    %v1290 = vmul.f32 %v1202, 0.87758255
    %v1291 = vmul.f32 %v1203, 0.87758255
    %v1292 = vmul.f32 %v1234, 0.47942555
    %v1293 = vmul.f32 %v1241, 0.47942555
    %v1294 = vmul.f32 %v1248, 0.47942555
    %v1295 = vmul.f32 %v1255, 0.47942555
    %v1296 = vmul.f32 %v1262, 0.47942555
    %v1297 = vmul.f32 %v1269, 0.47942555
    %v1298 = vmul.f32 %v1276, 0.47942555
    %v1299 = vmul.f32 %v1283, 0.47942555
    %v1300 = vsub.f32 %v1284, %v1292
    %v1301 = vsub.f32 %v1285, %v1293
    %v1302 = vsub.f32 %v1286, %v1294
    %v1303 = vsub.f32 %v1287, %v1295
    %v1304 = vsub.f32 %v1288, %v1296
    %v1305 = vsub.f32 %v1289, %v1297
    %v1306 = vsub.f32 %v1290, %v1298
    %v1307 = vsub.f32 %v1291, %v1299
    %v1308 = vsub.f32 %v1196, -0.87758255
    %v1309 = vsub.f32 %v1197, -0.87758255
    %v1310 = vsub.f32 %v1198, -0.87758255
    %v1311 = vsub.f32 %v1199, -0.87758255
    %v1312 = vsub.f32 %v1200, -0.87758255
    %v1313 = vsub.f32 %v1201, -0.87758255
    %v1314 = vsub.f32 %v1202, -0.87758255
    %v1315 = vsub.f32 %v1203, -0.87758255
    %vm1316 = vcmp.le.f32.partialorder %v1308, 0.0
    %vm1317 = vcmp.le.f32.partialorder %v1309, 0.0
    %vm1318 = vcmp.le.f32.partialorder %v1310, 0.0
    %vm1319 = vcmp.le.f32.partialorder %v1311, 0.0
    %vm1320 = vcmp.le.f32.partialorder %v1312, 0.0
    %vm1321 = vcmp.le.f32.partialorder %v1313, 0.0
    %vm1322 = vcmp.le.f32.partialorder %v1314, 0.0
    %vm1323 = vcmp.le.f32.partialorder %v1315, 0.0
    %v1324 = vsub.f32 %v1196, 0.23971277
    %v1325 = vsub.f32 %v1197, 0.23971277
    %v1326 = vsub.f32 %v1198, 0.23971277
    %v1327 = vsub.f32 %v1199, 0.23971277
    %v1328 = vsub.f32 %v1200, 0.23971277
    %v1329 = vsub.f32 %v1201, 0.23971277
    %v1330 = vsub.f32 %v1202, 0.23971277
    %v1331 = vsub.f32 %v1203, 0.23971277
    %v1332 = vsel %vm1316, %v1324, %v1300
    %v1333 = vsel %vm1317, %v1325, %v1301
    %v1334 = vsel %vm1318, %v1326, %v1302
    %v1335 = vsel %vm1319, %v1327, %v1303
    %v1336 = vsel %vm1320, %v1328, %v1304
    %v1337 = vsel %vm1321, %v1329, %v1305
    %v1338 = vsel %vm1322, %v1330, %v1306
    %v1339 = vsel %vm1323, %v1331, %v1307
    %v1340 = vlaneseq
    %v1341 = vand.u32 %v1340, 127
    %v1342 = vadd.s32 %v1341, 128
    %v1343 = vadd.s32 %v1341, 256
    %v1344 = vadd.s32 %v1341, 384
    %v1345 = vadd.s32 %v1341, 512
    %v1346 = vadd.s32 %v1341, 640
    %v1347 = vadd.s32 %v1341, 768
    %v1348 = vadd.s32 %v1341, 896
    %v1349 = vld [vmem:[%s2] sm:$0xff]
    %s1350 = smul.u32 0, 1024
    %v1351 = vstv %s1350
    %v1352 = vsub.s32 %v1349, %v1351
    %1353 = vset.pattern.permute.xlu0 0
    %1354 = vperm.xlu0 %1353, %v1352
    %v1355 = vpop.permute.xlu0 %1354
    %vm1356 = vcmp.eq.s32.totalorder %v1355, %v1341
    %vm1357 = vcmp.eq.s32.totalorder %v1355, %v1342
    %vm1358 = vcmp.eq.s32.totalorder %v1355, %v1343
    %vm1359 = vcmp.eq.s32.totalorder %v1355, %v1344
    %vm1360 = vcmp.eq.s32.totalorder %v1355, %v1345
    %vm1361 = vcmp.eq.s32.totalorder %v1355, %v1346
    %vm1362 = vcmp.eq.s32.totalorder %v1355, %v1347
    %vm1363 = vcmp.eq.s32.totalorder %v1355, %v1348
    %v1364 = vsel %vm1356, %v1332, %v1196
    %v1365 = vsel %vm1357, %v1333, %v1197
    %v1366 = vsel %vm1358, %v1334, %v1198
    %v1367 = vsel %vm1359, %v1335, %v1199
    %v1368 = vsel %vm1360, %v1336, %v1200
    %v1369 = vsel %vm1361, %v1337, %v1201
    %v1370 = vsel %vm1362, %v1338, %v1202
    %v1371 = vsel %vm1363, %v1339, %v1203
    %v1372 = vmul.f32 %v1364, 64.0
    %v1373 = vmul.f32 %v1365, 64.0
    %v1374 = vmul.f32 %v1366, 64.0
    %v1375 = vmul.f32 %v1367, 64.0
    %v1376 = vmul.f32 %v1368, 64.0
    %v1377 = vmul.f32 %v1369, 64.0
    %v1378 = vmul.f32 %v1370, 64.0
    %v1379 = vmul.f32 %v1371, 64.0
    %1380 = vst [vmem:[#allocation6] sm:$0xff] %v1372
    %1381 = vst [vmem:[#allocation6 + $0x8] sm:$0xff] %v1373
    %1382 = vst [vmem:[#allocation6 + $0x10] sm:$0xff] %v1374
    %1383 = vst [vmem:[#allocation6 + $0x18] sm:$0xff] %v1375
    %1384 = vst [vmem:[#allocation6 + $0x20] sm:$0xff] %v1376
    %1385 = vst [vmem:[#allocation6 + $0x28] sm:$0xff] %v1377
    %1386 = vst [vmem:[#allocation6 + $0x30] sm:$0xff] %v1378
    %1387 = vst [vmem:[#allocation6 + $0x38] sm:$0xff] %v1379
    // Predicated region
    $region22: #{tpu_custom_call.1} parent=1 // pred_check
      _
    $region23: #{tpu_custom_call.1} parent=1 // pred_check_branch
      %1389 = sbr.rel (0) target = $region25
    $region24: #{tpu_custom_call.1} parent=1 // pred_region
      %s1391 = ssub.s32 1024, 1024
      %1392 = vsyncadd [#allocation5], %s1391
      %s1394 = sshll.u32 [#allocation6], 4
      %s1395 = int_to_ptr.vmem [resolvable:$true] %s1394
      %1397 = dma.vmem_to_hbm [thread:$0]  %s1395, 1024, %s3, [#allocation5]
    $region25: #{tpu_custom_call.1} parent=1 // pred_fallthru
      _
    // Predicated region
    $region26: #{tpu_custom_call.1} parent=1 // pred_check
      _
    $region27: #{tpu_custom_call.1} parent=1 // pred_check_branch
      %1399 = sbr.rel (0) target = $region29
    $region28: #{tpu_custom_call.1} parent=1 // pred_region
      %1400 = dma.done [#allocation5], 1024
    $region29: #{tpu_custom_call.1} parent=1 // pred_fallthru
      _
    %1401 = vsyncpa [#allocation4], 1
    %1402 = vsyncpa [#allocation5], 1

</llo_original>
